<compile_context>
chip_gen: v5e
topology: v5e:2x2
jax: 0.10.0
libtpu: 0.0.40
codegen_flags: <defaults>
</compile_context>

<pallas_src>
import functools
import math

import jax
import jax.numpy as jnp
from jax.experimental import pallas as pl
from jax.experimental.pallas import tpu as pltpu


# ----------------------------------- kernel -----------------------------------

def _dice_kernel(*refs, limit, tile_cols, tiles_per_chunk, needs_mask, has_mask):
    """Accumulate per-row sum(p*t), sum(p*p), sum(t*t) into resident out blocks.

    refs = (p_ref, t_ref[, m_ref], a_out, b_out, c_out); blocks are
    (rows, tile_cols) for inputs and (rows, 1) f32 for the three outputs, which
    stay resident across the (reduction) tile axis of the grid.
    """
    if has_mask:
        p_ref, t_ref, m_ref, a_out, b_out, c_out = refs
    else:
        p_ref, t_ref, a_out, b_out, c_out = refs
        m_ref = None

    t_idx = pl.program_id(1)

    @pl.when(t_idx == 0)
    def _init():
        a_out[...] = jnp.zeros_like(a_out)
        b_out[...] = jnp.zeros_like(b_out)
        c_out[...] = jnp.zeros_like(c_out)

    # Stream in original dtype; cast to f32 per tile (keeps HBM traffic minimal).
    p = p_ref[...].astype(jnp.float32)
    t = t_ref[...].astype(jnp.float32)
    if has_mask:
        m = m_ref[...].astype(jnp.float32)
        p = p * m
        t = t * m

    def _accum(pp, tt):
        # Per-step lane reduction (VALU adds + one XLU reduce); accumulate into
        # the tiny resident output blocks — no full-width scratch traffic.
        a_out[...] += jnp.sum(pp * tt, axis=1, keepdims=True)
        b_out[...] += jnp.sum(pp * pp, axis=1, keepdims=True)
        c_out[...] += jnp.sum(tt * tt, axis=1, keepdims=True)

    if needs_mask:
        c_idx = pl.program_id(0)
        start = (c_idx * tiles_per_chunk + t_idx) * tile_cols
        is_tail = start + tile_cols > limit

        @pl.when(jnp.logical_not(is_tail))
        def _interior():          # interior tiles: no mask work at all
            _accum(p, t)

        @pl.when(is_tail)
        def _tail():              # boundary / overshoot tiles: select invalid cols to 0
            col = start + jax.lax.broadcasted_iota(jnp.int32, p.shape, 1)
            valid = col < limit
            _accum(jnp.where(valid, p, 0.0), jnp.where(valid, t, 0.0))
    else:
        _accum(p, t)


# ---------------------------------- wrapper ------------------------------------

def _vmem_defaults():
    """Generation-aware (budget, vmem_limit) in bytes.  Conservative fallback."""
    try:
        cap = int(getattr(pltpu.get_tpu_info(), "vmem_capacity_bytes", 0)) or (64 << 20)
    except Exception:
        cap = 64 << 20                      # safe even on v7x (64 MiB per TensorCore)
    budget = max(8 << 20, min(cap // 2, 48 << 20))
    limit = max(budget, min(budget + (16 << 20), cap - (8 << 20)))
    return budget, limit


def _default_num_chunks():
    """2 parallel chunks only on multi-TensorCore parts (v7x); 1 on v5e/v6e."""
    try:
        kind = jax.devices()[0].device_kind.lower()
    except Exception:
        kind = ""
    return 2 if "7" in kind else 1


def _pick_row_split(N, HW, itemsize):
    """Smallest G with G | HW and (HW/G) % 128 == 0 such that N*G fills the
    sublane packing factor (8 for 32-bit, 16 for bf16/fp16, 32 for int8), so
    vregs are fully populated even for small N.  Returns 1 if not possible."""
    if HW % 128 != 0:
        return 1
    cols_units = HW // 128
    candidates = [8] if itemsize >= 4 else [32 // itemsize, 8]
    for s in candidates:
        g = s // math.gcd(N, s)
        if cols_units % g == 0:
            return g
    return 1


def _per_sample_dice_loss(pred, target, mask=None, eps=1e-6,
                          num_chunks=None, vmem_budget_bytes=None,
                          vmem_limit_bytes=None):
    """Per-sample dice loss, shape (N,); the hot reductions run in Pallas."""
    N, H, W = pred.shape
    HW = H * W
    has_mask = mask is not None

    arrays = [pred, target] + ([mask] if has_mask else [])
    n_inputs = len(arrays)
    itemsize = max(jnp.dtype(a.dtype).itemsize for a in arrays)

    if num_chunks is None:
        num_chunks = _default_num_chunks()
    if vmem_budget_bytes is None or vmem_limit_bytes is None:
        d_budget, d_limit = _vmem_defaults()
        if vmem_budget_bytes is None:
            vmem_budget_bytes = d_budget
        if vmem_limit_bytes is None:
            vmem_limit_bytes = max(d_limit, int(vmem_budget_bytes))

    # Free row-major reshape: (N, HW) -> (N*G, HW/G) to fill sublanes.
    G = _pick_row_split(N, HW, itemsize)
    rows = N * G
    cols = HW // G
    inputs = [a.reshape(rows, cols) for a in arrays]

    # Biggest 128-multiple column tile that keeps double-buffered inputs plus
    # the in-kernel f32 temporaries (~32 B/row/col headroom) under the budget.
    per_col_bytes = rows * (n_inputs * 2 * itemsize + 32)
    fit = max(128, (int(vmem_budget_bytes) // per_col_bytes) // 128 * 128)
    if cols % 128 == 0:
        tile_cols = int(min(cols, fit))
    elif cols < 128:
        tile_cols = cols                       # full extent (allowed: equals dim)
    else:
        tile_cols = int(min((cols // 128) * 128, fit))

    n_tiles = pl.cdiv(cols, tile_cols)
    n_chunks = max(1, min(int(num_chunks), n_tiles))
    tiles_per_chunk = pl.cdiv(n_tiles, n_chunks)
    # Ragged column tail or overshoot tiles (duplicated last block, fully masked).
    needs_mask = (n_chunks * tiles_per_chunk * tile_cols) != cols

    def in_map(c, t):
        # Clamp so overshoot grid steps re-read the last block (masked to zero).
        return (0, jnp.minimum(c * tiles_per_chunk + t, n_tiles - 1))

    in_spec = pl.BlockSpec((rows, tile_cols), in_map)
    out_spec = pl.BlockSpec((None, rows, 1), lambda c, t: (c, 0, 0))
    out_shape = jax.ShapeDtypeStruct((n_chunks, rows, 1), jnp.float32)

    kernel = functools.partial(
        _dice_kernel, limit=cols, tile_cols=tile_cols,
        tiles_per_chunk=tiles_per_chunk, needs_mask=needs_mask, has_mask=has_mask)

    a_p, b_p, c_p = pl.pallas_call(
        kernel,
        out_shape=(out_shape, out_shape, out_shape),
        grid_spec=pltpu.PrefetchScalarGridSpec(
            num_scalar_prefetch=0,
            grid=(n_chunks, tiles_per_chunk),
            in_specs=[in_spec] * n_inputs,
            out_specs=(out_spec, out_spec, out_spec),
        ),
        compiler_params=pltpu.CompilerParams(
            dimension_semantics=("parallel", "arbitrary"),
            vmem_limit_bytes=int(vmem_limit_bytes)),
    )(*inputs)

    # Tiny finishing glue in XLA: fold chunk + row-split partials, apply formula.
    a = jnp.sum(a_p.reshape(n_chunks, N, G), axis=(0, 2))
    b = jnp.sum(b_p.reshape(n_chunks, N, G), axis=(0, 2)) + eps
    c = jnp.sum(c_p.reshape(n_chunks, N, G), axis=(0, 2)) + eps
    return 1.0 - 2.0 * a / (b + c)


class DiceLossPallas:
    """JAX/Pallas port of the mmdet-style DiceLoss forward."""

    def __init__(self, eps=1e-6, reduction='mean', loss_weight=1.0):
        self.eps = eps
        self.reduction = reduction
        self.loss_weight = loss_weight
        self.count = 0

    def __call__(self, pred, target, weight=None, mask=None, avg_factor=None,
                 reduction_override=None):
        assert reduction_override in (None, 'none', 'mean', 'sum')
        reduction = reduction_override if reduction_override else self.reduction

        loss = _per_sample_dice_loss(pred, target, mask=mask, eps=self.eps)

        # mmdet weight_reduce_loss semantics (tiny glue vs. the HW reduction).
        if weight is not None:
            loss = loss * weight.astype(jnp.float32)
        if avg_factor is None:
            if reduction == 'mean':
                loss = jnp.mean(loss)
            elif reduction == 'sum':
                loss = jnp.sum(loss)
        else:
            if reduction == 'mean':
                loss = jnp.sum(loss) / avg_factor
            elif reduction != 'none':
                raise ValueError('avg_factor can not be used with reduction="sum"')
        return self.loss_weight * loss


# ------------------------------ pure-JAX reference ------------------------------

def _per_sample_reference(pred, target, mask=None, eps=1e-6):
    N = pred.shape[0]
    p = pred.reshape(N, -1).astype(jnp.float32)
    t = target.reshape(N, -1).astype(jnp.float32)
    if mask is not None:
        m = mask.reshape(N, -1).astype(jnp.float32)
        p = p * m
        t = t * m
    a = jnp.sum(p * t, axis=1)
    b = jnp.sum(p * p, axis=1) + eps
    c = jnp.sum(t * t, axis=1) + eps
    return 1.0 - 2.0 * a / (b + c)


def _reference(pred, target, weight=None, mask=None, eps=1e-6,
               reduction='mean', loss_weight=1.0):
    loss = _per_sample_reference(pred, target, mask=mask, eps=eps)
    if weight is not None:
        loss = loss * weight.astype(jnp.float32)
    if reduction == 'mean':
        loss = jnp.mean(loss)
    elif reduction == 'sum':
        loss = jnp.sum(loss)
    return loss_weight * loss


if __name__ == "__main__":
    key = jax.random.PRNGKey(0)
    k1, k2, k3 = jax.random.split(key, 3)

    # 1) main case: N=4, 16x16 -> HW=256 (128-aligned): row-split path (G=2, rows=8)
    N, H, W = 4, 16, 16
    pred = jax.nn.sigmoid(jax.random.normal(k1, (N, H, W), dtype=jnp.float32))
    target = (jax.random.uniform(k2, (N, H, W)) > 0.5).astype(jnp.float32)
    mask = (jax.random.uniform(k3, (N, H, W)) > 0.2).astype(jnp.float32)

    loss_mod = DiceLossPallas(eps=1e-6, reduction='mean', loss_weight=1.0)

    out = jax.block_until_ready(loss_mod(pred, target))
    ref = _reference(pred, target, eps=1e-6, reduction='mean')
    assert jnp.allclose(out, ref, rtol=1e-5, atol=1e-6), (out, ref)

    # 2) masked + per-sample weight
    weight = jnp.array([1.0, 0.5, 2.0, 0.0], dtype=jnp.float32)
    out_m = jax.block_until_ready(loss_mod(pred, target, weight=weight, mask=mask))
    ref_m = _reference(pred, target, weight=weight, mask=mask, eps=1e-6,
                       reduction='mean')
    assert jnp.allclose(out_m, ref_m, rtol=1e-5, atol=1e-6), (out_m, ref_m)

    # 3) ragged HW (368, not 128-aligned): G=1 flat path with in-kernel tail mask
    N2, H2, W2 = 4, 16, 23
    p2 = jax.nn.sigmoid(jax.random.normal(k1, (N2, H2, W2), dtype=jnp.float32))
    t2 = (jax.random.uniform(k2, (N2, H2, W2)) > 0.5).astype(jnp.float32)
    m2 = (jax.random.uniform(k3, (N2, H2, W2)) > 0.3).astype(jnp.float32)

    per = jax.block_until_ready(_per_sample_dice_loss(p2, t2, eps=1e-6))
    assert jnp.allclose(per, _per_sample_reference(p2, t2, eps=1e-6),
                        rtol=1e-5, atol=1e-6)

    # 3b) forced tiny tiles + 2 chunks: multi-tile, overshoot tile, tail mask, mask input
    per_f = jax.block_until_ready(_per_sample_dice_loss(
        p2, t2, mask=m2, eps=1e-6, num_chunks=2, vmem_budget_bytes=48 * 1024))
    assert jnp.allclose(per_f, _per_sample_reference(p2, t2, mask=m2, eps=1e-6),
                        rtol=1e-5, atol=1e-6)

    # 4) multi-tile / multi-chunk accumulation on the row-split path (G=4, rows=8)
    N3, H3, W3 = 2, 32, 64
    p3 = jax.nn.sigmoid(jax.random.normal(k1, (N3, H3, W3), dtype=jnp.float32))
    t3 = (jax.random.uniform(k2, (N3, H3, W3)) > 0.5).astype(jnp.float32)
    per3 = jax.block_until_ready(_per_sample_dice_loss(
        p3, t3, eps=1e-6, num_chunks=2, vmem_budget_bytes=48 * 1024))
    assert jnp.allclose(per3, _per_sample_reference(p3, t3, eps=1e-6),
                        rtol=1e-5, atol=1e-6)

    # 5) bf16 inputs streamed in original dtype; f32 cast happens in-kernel
    p_bf = pred.astype(jnp.bfloat16)
    t_bf = target.astype(jnp.bfloat16)
    per_bf = jax.block_until_ready(_per_sample_dice_loss(p_bf, t_bf, eps=1e-6))
    per_bf_ref = _per_sample_reference(p_bf.astype(jnp.float32),
                                       t_bf.astype(jnp.float32), eps=1e-6)
    assert jnp.allclose(per_bf, per_bf_ref, rtol=1e-4, atol=1e-5), (per_bf, per_bf_ref)

    print("KERNEL_OK")
</pallas_src>

<mosaic_0001>
module attributes {stable_mosaic.version = 11 : i64} {
  func.func @_dice_kernel(%arg0: i32, %arg1: i32, %arg2: memref<8x128xf32, #tpu.memory_space<vmem>>, %arg3: memref<8x128xf32, #tpu.memory_space<vmem>>, %arg4: memref<1x8x1xf32, #tpu.memory_space<vmem>>, %arg5: memref<1x8x1xf32, #tpu.memory_space<vmem>>, %arg6: memref<1x8x1xf32, #tpu.memory_space<vmem>>) attributes {dimension_semantics = [#tpu.dimension_semantics<parallel>, #tpu.dimension_semantics<arbitrary>], iteration_bounds = array<i64: 1, 1>, scalar_prefetch = 0 : i64, scratch_operands = 0 : i64, tpu.core_type = #tpu.core_type<tc>, window_params = [{transform_indices = @transform_0, window_bounds = array<i64: 8, 128>}, {transform_indices = @transform_1, window_bounds = array<i64: 8, 128>}, {transform_indices = @transform_2, window_bounds = array<i64: 1, 8, 1>}, {transform_indices = @transform_3, window_bounds = array<i64: 1, 8, 1>}, {transform_indices = @transform_4, window_bounds = array<i64: 1, 8, 1>}]} {
    %c0_i32 = arith.constant 0 : i32
    %0 = arith.cmpi eq, %arg1, %c0_i32 : i32
    %1 = arith.extui %0 : i1 to i32
    %c0_i32_0 = arith.constant 0 : i32
    %2 = arith.cmpi ne, %1, %c0_i32_0 : i32
    scf.if %2 {
      %cst_24 = arith.constant 0.000000e+00 : f32
      %32 = vector.broadcast %cst_24 : f32 to vector<8x1xf32>
      %c0_25 = arith.constant 0 : index
      %c0_26 = arith.constant 0 : index
      %c0_27 = arith.constant 0 : index
      %33 = vector.load %arg4[%c0_25, %c0_26, %c0_27] : memref<1x8x1xf32, #tpu.memory_space<vmem>>, vector<1x8x1xf32>
      %34 = vector.shape_cast %33 : vector<1x8x1xf32> to vector<8x1xf32>
      %35 = vector.shape_cast %32 : vector<8x1xf32> to vector<1x8x1xf32>
      tpu.vector_store %arg4[%c0_25, %c0_26, %c0_27], %35 {strides = array<i32>} : memref<1x8x1xf32, #tpu.memory_space<vmem>>, vector<1x8x1xf32>,
      %cst_28 = arith.constant 0.000000e+00 : f32
      %36 = vector.broadcast %cst_28 : f32 to vector<8x1xf32>
      %c0_29 = arith.constant 0 : index
      %c0_30 = arith.constant 0 : index
      %c0_31 = arith.constant 0 : index
      %37 = vector.load %arg5[%c0_29, %c0_30, %c0_31] : memref<1x8x1xf32, #tpu.memory_space<vmem>>, vector<1x8x1xf32>
      %38 = vector.shape_cast %37 : vector<1x8x1xf32> to vector<8x1xf32>
      %39 = vector.shape_cast %36 : vector<8x1xf32> to vector<1x8x1xf32>
      tpu.vector_store %arg5[%c0_29, %c0_30, %c0_31], %39 {strides = array<i32>} : memref<1x8x1xf32, #tpu.memory_space<vmem>>, vector<1x8x1xf32>,
      %cst_32 = arith.constant 0.000000e+00 : f32
      %40 = vector.broadcast %cst_32 : f32 to vector<8x1xf32>
      %c0_33 = arith.constant 0 : index
      %c0_34 = arith.constant 0 : index
      %c0_35 = arith.constant 0 : index
      %41 = vector.load %arg6[%c0_33, %c0_34, %c0_35] : memref<1x8x1xf32, #tpu.memory_space<vmem>>, vector<1x8x1xf32>
      %42 = vector.shape_cast %41 : vector<1x8x1xf32> to vector<8x1xf32>
      %43 = vector.shape_cast %40 : vector<8x1xf32> to vector<1x8x1xf32>
      tpu.vector_store %arg6[%c0_33, %c0_34, %c0_35], %43 {strides = array<i32>} : memref<1x8x1xf32, #tpu.memory_space<vmem>>, vector<1x8x1xf32>,
    } else {
    }
    %c0 = arith.constant 0 : index
    %c0_1 = arith.constant 0 : index
    %3 = vector.load %arg2[%c0, %c0_1] : memref<8x128xf32, #tpu.memory_space<vmem>>, vector<8x128xf32>
    %c0_2 = arith.constant 0 : index
    %c0_3 = arith.constant 0 : index
    %4 = vector.load %arg3[%c0_2, %c0_3] : memref<8x128xf32, #tpu.memory_space<vmem>>, vector<8x128xf32>
    %c0_4 = arith.constant 0 : index
    %c0_5 = arith.constant 0 : index
    %c0_6 = arith.constant 0 : index
    %5 = vector.load %arg4[%c0_4, %c0_5, %c0_6] : memref<1x8x1xf32, #tpu.memory_space<vmem>>, vector<1x8x1xf32>
    %6 = vector.shape_cast %5 : vector<1x8x1xf32> to vector<8x1xf32>
    %7 = arith.mulf %3, %4 : vector<8x128xf32>
    %cst = arith.constant dense<0.000000e+00> : vector<8xf32>
    %8 = vector.multi_reduction <add>, %7, %cst [1] : vector<8x128xf32> to vector<8xf32>
    %9 = vector.shape_cast %8 : vector<8xf32> to vector<8x1xf32>
    %10 = arith.addf %6, %9 : vector<8x1xf32>
    %c0_7 = arith.constant 0 : index
    %c0_8 = arith.constant 0 : index
    %c0_9 = arith.constant 0 : index
    %11 = vector.load %arg4[%c0_7, %c0_8, %c0_9] : memref<1x8x1xf32, #tpu.memory_space<vmem>>, vector<1x8x1xf32>
    %12 = vector.shape_cast %11 : vector<1x8x1xf32> to vector<8x1xf32>
    %13 = vector.shape_cast %10 : vector<8x1xf32> to vector<1x8x1xf32>
    tpu.vector_store %arg4[%c0_7, %c0_8, %c0_9], %13 {strides = array<i32>} : memref<1x8x1xf32, #tpu.memory_space<vmem>>, vector<1x8x1xf32>,
    %c0_10 = arith.constant 0 : index
    %c0_11 = arith.constant 0 : index
    %c0_12 = arith.constant 0 : index
    %14 = vector.load %arg5[%c0_10, %c0_11, %c0_12] : memref<1x8x1xf32, #tpu.memory_space<vmem>>, vector<1x8x1xf32>
    %15 = vector.shape_cast %14 : vector<1x8x1xf32> to vector<8x1xf32>
    %16 = arith.mulf %3, %3 : vector<8x128xf32>
    %cst_13 = arith.constant dense<0.000000e+00> : vector<8xf32>
    %17 = vector.multi_reduction <add>, %16, %cst_13 [1] : vector<8x128xf32> to vector<8xf32>
    %18 = vector.shape_cast %17 : vector<8xf32> to vector<8x1xf32>
    %19 = arith.addf %15, %18 : vector<8x1xf32>
    %c0_14 = arith.constant 0 : index
    %c0_15 = arith.constant 0 : index
    %c0_16 = arith.constant 0 : index
    %20 = vector.load %arg5[%c0_14, %c0_15, %c0_16] : memref<1x8x1xf32, #tpu.memory_space<vmem>>, vector<1x8x1xf32>
    %21 = vector.shape_cast %20 : vector<1x8x1xf32> to vector<8x1xf32>
    %22 = vector.shape_cast %19 : vector<8x1xf32> to vector<1x8x1xf32>
    tpu.vector_store %arg5[%c0_14, %c0_15, %c0_16], %22 {strides = array<i32>} : memref<1x8x1xf32, #tpu.memory_space<vmem>>, vector<1x8x1xf32>,
    %c0_17 = arith.constant 0 : index
    %c0_18 = arith.constant 0 : index
    %c0_19 = arith.constant 0 : index
    %23 = vector.load %arg6[%c0_17, %c0_18, %c0_19] : memref<1x8x1xf32, #tpu.memory_space<vmem>>, vector<1x8x1xf32>
    %24 = vector.shape_cast %23 : vector<1x8x1xf32> to vector<8x1xf32>
    %25 = arith.mulf %4, %4 : vector<8x128xf32>
    %cst_20 = arith.constant dense<0.000000e+00> : vector<8xf32>
    %26 = vector.multi_reduction <add>, %25, %cst_20 [1] : vector<8x128xf32> to vector<8xf32>
    %27 = vector.shape_cast %26 : vector<8xf32> to vector<8x1xf32>
    %28 = arith.addf %24, %27 : vector<8x1xf32>
    %c0_21 = arith.constant 0 : index
    %c0_22 = arith.constant 0 : index
    %c0_23 = arith.constant 0 : index
    %29 = vector.load %arg6[%c0_21, %c0_22, %c0_23] : memref<1x8x1xf32, #tpu.memory_space<vmem>>, vector<1x8x1xf32>
    %30 = vector.shape_cast %29 : vector<1x8x1xf32> to vector<8x1xf32>
    %31 = vector.shape_cast %28 : vector<8x1xf32> to vector<1x8x1xf32>
    tpu.vector_store %arg6[%c0_21, %c0_22, %c0_23], %31 {strides = array<i32>} : memref<1x8x1xf32, #tpu.memory_space<vmem>>, vector<1x8x1xf32>,
    return
  }
  func.func @transform_0(%arg0: i32, %arg1: i32) -> (i32, i32) {
    %c1_i32 = arith.constant 1 : i32
    %0 = arith.muli %arg0, %c1_i32 : i32
    %1 = arith.addi %0, %arg1 : i32
    %c0_i32 = arith.constant 0 : i32
    %2 = arith.minsi %1, %c0_i32 : i32
    %c0_i32_0 = arith.constant 0 : i32
    %c0_i32_1 = arith.constant 0 : i32
    return %c0_i32_0, %2 : i32, i32
  }
  func.func @transform_1(%arg0: i32, %arg1: i32) -> (i32, i32) {
    %c1_i32 = arith.constant 1 : i32
    %0 = arith.muli %arg0, %c1_i32 : i32
    %1 = arith.addi %0, %arg1 : i32
    %c0_i32 = arith.constant 0 : i32
    %2 = arith.minsi %1, %c0_i32 : i32
    %c0_i32_0 = arith.constant 0 : i32
    %c0_i32_1 = arith.constant 0 : i32
    return %c0_i32_0, %2 : i32, i32
  }
  func.func @transform_2(%arg0: i32, %arg1: i32) -> (i32, i32, i32) {
    %c0_i32 = arith.constant 0 : i32
    %c0_i32_0 = arith.constant 0 : i32
    %c0_i32_1 = arith.constant 0 : i32
    return %arg0, %c0_i32, %c0_i32_0 : i32, i32, i32
  }
  func.func @transform_3(%arg0: i32, %arg1: i32) -> (i32, i32, i32) {
    %c0_i32 = arith.constant 0 : i32
    %c0_i32_0 = arith.constant 0 : i32
    %c0_i32_1 = arith.constant 0 : i32
    return %arg0, %c0_i32, %c0_i32_0 : i32, i32, i32
  }
  func.func @transform_4(%arg0: i32, %arg1: i32) -> (i32, i32, i32) {
    %c0_i32 = arith.constant 0 : i32
    %c0_i32_0 = arith.constant 0 : i32
    %c0_i32_1 = arith.constant 0 : i32
    return %arg0, %c0_i32, %c0_i32_0 : i32, i32, i32
  }
}

</mosaic_0001>

<llo_original>
// kernel: tpu_custom_call.1
$region0: #{tpu_custom_call.1}
  #allocation0 [shape = 'u32[]', space=smem, size = 0x4, offset = 0x4, fixed_abs, tag = 'smem constant byte address 0x4 - core index']
  #allocation1 [shape = 'u32[72,128]{1,0:T(1,128)}', space=vmem, size = 0x9000, scoped, tag = 'internal scratch']
  %s0 = inlined_call_operand.hbm [shape: f32[8,128], index: 0, kind: input, shape index: {}]
  %s1 = inlined_call_operand.hbm [shape: f32[8,128], index: 1, kind: input, shape index: {}]
  %s2 = inlined_call_operand.vmem [shape: f32[1,8,1], index: 2, kind: output, shape index: {0}]
  %s3 = inlined_call_operand.vmem [shape: f32[1,8,1], index: 3, kind: output, shape index: {1}]
  %s4 = inlined_call_operand.vmem [shape: f32[1,8,1], index: 4, kind: output, shape index: {2}]
  %5 = xla_tuple %s2, %s3, %s4
  %s6 = sld [smem:[#allocation0]]
  $region46: #{tpu_custom_call.1} parent=0
    _
  %s8 = ssub.s32 1, %s6
  %s9 = scalar_select 0, %s8, %s6
  $region1: #{tpu_custom_call.1} parent=0
    #allocation2 [shape = 'u8[4096]{0}', space=vmem, size = 0x1000, scoped, tag = 'input window, operand 0, single buffered']
    #allocation3 [shape = 's32[1]{0}', space=sflag, size = 0x4, scoped, tag = 'scoped memory for tpu_custom_call.1']
    #allocation4 [shape = 'u8[4096]{0}', space=vmem, size = 0x1000, scoped, tag = 'input window, operand 1, single buffered']
    #allocation5 [shape = 's32[1]{0}', space=sflag, size = 0x4, scoped, tag = 'scoped memory for tpu_custom_call.1']
    %10 = vsyncpa [#allocation3], 0
    %11 = vsyncpa [#allocation5], 0
    // Predicated region
    $region2: #{tpu_custom_call.1} parent=1 // pred_check
      _
    $region3: #{tpu_custom_call.1} parent=1 // pred_check_branch
      %13 = sbr.rel (0) target = $region5
    $region4: #{tpu_custom_call.1} parent=1 // pred_region
      %s14 = sadd.s32 0, 0
      %p15 = scmp.lt.s32.totalorder %s14, 0
      %s16 = scalar_select %p15, %s14, 0
      %18 = vsyncadd [#allocation3], 0
      %s19 = smul.addr %s16, 8
      %s20 = scalar_lea.hbm %s0, %s19
      %s22 = sshll.u32 %s20, 4
      %s23 = int_to_ptr.hbm [resolvable:$true] %s22
      %s24 = sshll.u32 [#allocation2], 4
      %s25 = int_to_ptr.vmem [resolvable:$true] %s24
      %27 = dma.hbm_to_vmem [thread:$0]  %s23, 128, %s25, [#allocation3]
    $region5: #{tpu_custom_call.1} parent=1 // pred_fallthru
      _
    // Predicated region
    $region6: #{tpu_custom_call.1} parent=1 // pred_check
      _
    $region7: #{tpu_custom_call.1} parent=1 // pred_check_branch
      %29 = sbr.rel (0) target = $region9
    $region8: #{tpu_custom_call.1} parent=1 // pred_region
      %s30 = sadd.s32 0, 0
      %p31 = scmp.lt.s32.totalorder %s30, 0
      %s32 = scalar_select %p31, %s30, 0
      %34 = vsyncadd [#allocation5], 0
      %s35 = smul.addr %s32, 8
      %s36 = scalar_lea.hbm %s1, %s35
      %s38 = sshll.u32 %s36, 4
      %s39 = int_to_ptr.hbm [resolvable:$true] %s38
      %s40 = sshll.u32 [#allocation4], 4
      %s41 = int_to_ptr.vmem [resolvable:$true] %s40
      %43 = dma.hbm_to_vmem [thread:$0]  %s39, 128, %s41, [#allocation5]
    $region9: #{tpu_custom_call.1} parent=1 // pred_fallthru
      _
    // Predicated region
    $region10: #{tpu_custom_call.1} parent=1 // pred_check
      _
    $region11: #{tpu_custom_call.1} parent=1 // pred_check_branch
      %45 = sbr.rel (0) target = $region13
    $region12: #{tpu_custom_call.1} parent=1 // pred_region
      %47 = dma.done [#allocation3], 128
    $region13: #{tpu_custom_call.1} parent=1 // pred_fallthru
      _
    // Predicated region
    $region14: #{tpu_custom_call.1} parent=1 // pred_check
      _
    $region15: #{tpu_custom_call.1} parent=1 // pred_check_branch
      %49 = sbr.rel (0) target = $region17
    $region16: #{tpu_custom_call.1} parent=1 // pred_region
      %51 = dma.done [#allocation5], 128
    $region17: #{tpu_custom_call.1} parent=1 // pred_fallthru
      _
    %s52 = sadd.s32 0, 0
    %p53 = scmp.lt.s32.totalorder %s52, 0
    %s54 = scalar_select %p53, %s52, 0
    %s55 = sadd.s32 0, 0
    %p56 = scmp.lt.s32.totalorder %s55, 0
    %s57 = scalar_select %p56, %s55, 0
    %p58 = scmp.eq.s32.totalorder 0, 0
    // Predicated region
    $region18: #{tpu_custom_call.1} parent=1 // pred_check
      %p59 = pneg %p58
    $region19: #{tpu_custom_call.1} parent=1 // pred_check_branch
      %61 = sbr.rel (%p59) target = $region21
    $region20: #{tpu_custom_call.1} parent=1 // pred_region
      %vm62 = vcmask 7168
      %63 = vst.msk [vmem:[%s2] sm:$0xff] %vm62, 0.0
      %64 = vst.msk [vmem:[%s3] sm:$0xff] %vm62, 0.0
      %65 = vst.msk [vmem:[%s4] sm:$0xff] %vm62, 0.0
    $region21: #{tpu_custom_call.1} parent=1 // pred_fallthru
      _
    %v66 = vld [vmem:[#allocation2] sm:$0xff]
    %v67 = vld [vmem:[#allocation4] sm:$0xff]
    %v68 = vld [vmem:[%s2] sm:$0xff]
    %v69 = vmul.f32 %v66, %v67
    %70 = vadd.xlane.f32.xlu0 %v69
    %v71 = vpop.xlane.xlu0 %70
    %v72 = vadd.f32 %v68, %v71
    %vm73 = vcmask 7168
    %74 = vst.msk [vmem:[%s2] sm:$0xff] %vm73, %v72
    %v75 = vld [vmem:[%s3] sm:$0xff]
    %v76 = vmul.f32 %v66, %v66
    %77 = vadd.xlane.f32.xlu0 %v76
    %v78 = vpop.xlane.xlu0 %77
    %v79 = vadd.f32 %v75, %v78
    %80 = vst.msk [vmem:[%s3] sm:$0xff] %vm73, %v79
    %v81 = vld [vmem:[%s4] sm:$0xff]
    %v82 = vmul.f32 %v67, %v67
    %83 = vadd.xlane.f32.xlu0 %v82
    %v84 = vpop.xlane.xlu0 %83
    %v85 = vadd.f32 %v81, %v84
    %86 = vst.msk [vmem:[%s4] sm:$0xff] %vm73, %v85
    // Predicated region
    $region22: #{tpu_custom_call.1} parent=1 // pred_check
      _
    $region23: #{tpu_custom_call.1} parent=1 // pred_check_branch
      %88 = sbr.rel (0) target = $region25
    $region24: #{tpu_custom_call.1} parent=1 // pred_region
      _
    $region25: #{tpu_custom_call.1} parent=1 // pred_fallthru
      _
    // Predicated region
    $region26: #{tpu_custom_call.1} parent=1 // pred_check
      _
    $region27: #{tpu_custom_call.1} parent=1 // pred_check_branch
      %90 = sbr.rel (0) target = $region29
    $region28: #{tpu_custom_call.1} parent=1 // pred_region
      _
    $region29: #{tpu_custom_call.1} parent=1 // pred_fallthru
      _
    // Predicated region
    $region30: #{tpu_custom_call.1} parent=1 // pred_check
      _
    $region31: #{tpu_custom_call.1} parent=1 // pred_check_branch
      %92 = sbr.rel (0) target = $region33
    $region32: #{tpu_custom_call.1} parent=1 // pred_region
      _
    $region33: #{tpu_custom_call.1} parent=1 // pred_fallthru
      _
    // Predicated region
    $region34: #{tpu_custom_call.1} parent=1 // pred_check
      _
    $region35: #{tpu_custom_call.1} parent=1 // pred_check_branch
      %94 = sbr.rel (0) target = $region37
    $region36: #{tpu_custom_call.1} parent=1 // pred_region
      _
    $region37: #{tpu_custom_call.1} parent=1 // pred_fallthru
      _
    // Predicated region
    $region38: #{tpu_custom_call.1} parent=1 // pred_check
      _
    $region39: #{tpu_custom_call.1} parent=1 // pred_check_branch
      %96 = sbr.rel (0) target = $region41
    $region40: #{tpu_custom_call.1} parent=1 // pred_region
      _
    $region41: #{tpu_custom_call.1} parent=1 // pred_fallthru
      _
    // Predicated region
    $region42: #{tpu_custom_call.1} parent=1 // pred_check
      _
    $region43: #{tpu_custom_call.1} parent=1 // pred_check_branch
      %98 = sbr.rel (0) target = $region45
    $region44: #{tpu_custom_call.1} parent=1 // pred_region
      _
    $region45: #{tpu_custom_call.1} parent=1 // pred_fallthru
      _
    %99 = vsyncpa [#allocation3], 1
    %100 = vsyncpa [#allocation5], 1

</llo_original>
